<compile_context>
chip_gen: v7x
topology: tpu7x:2x2x1
jax: 0.10.0
libtpu: 0.0.40
codegen_flags: <defaults>
</compile_context>

<pallas_src>
import functools

import jax
import jax.numpy as jnp
from jax import lax
from jax.experimental import pallas as pl
from jax.experimental.pallas import tpu as pltpu


# ------------------------------------------------------------------ helpers
def _pick_block(dim, target):
    """Largest block <= target that divides dim and is a multiple of 8 (or dim itself)."""
    if dim <= target:
        return dim
    for b in range(target - target % 8, 7, -8):
        if dim % b == 0:
            return b
    return dim


def _maybe_vmem_limit(bytes_needed):
    # Only raise the scoped VMEM limit when the estimate exceeds the most
    # conservative default (16 MiB on v5e); cap well below physical VMEM.
    default_scoped = 16 * 1024 * 1024
    if bytes_needed <= default_scoped:
        return None
    return min(int(bytes_needed), 96 * 1024 * 1024)


# -------------------------------------------- kernel 1: projection head + L2 normalize
def projection_kernel(x_ref, w1_ref, w2_ref, zn_ref):
    # h = ReLU(x @ W1); z = h @ W2; zn = z / ||z||  (f32 accumulate / elementwise)
    x = x_ref[...]
    h = jnp.dot(x, w1_ref[...], preferred_element_type=jnp.float32)
    h = jnp.maximum(h, 0.0).astype(x_ref.dtype)
    z = jnp.dot(h, w2_ref[...], preferred_element_type=jnp.float32)
    inv_norm = lax.rsqrt(jnp.maximum(jnp.sum(z * z, axis=-1, keepdims=True), 1e-12))
    zn_ref[...] = (z * inv_norm).astype(zn_ref.dtype)


def _project_normalize(x, w1, w2):
    two_n, d_in = x.shape
    d_proj = w2.shape[1]
    br = _pick_block(two_n, 256)
    itemsize = x.dtype.itemsize
    est = ((2 * br * d_in + d_in * d_in + d_in * d_proj + 2 * br * d_proj) * itemsize
           + 3 * br * max(d_in, d_proj) * 4)
    return pl.pallas_call(
        projection_kernel,
        out_shape=jax.ShapeDtypeStruct((two_n, d_proj), x.dtype),
        grid_spec=pltpu.PrefetchScalarGridSpec(
            num_scalar_prefetch=0,
            grid=(two_n // br,),
            in_specs=[
                pl.BlockSpec((br, d_in), lambda i: (i, 0)),        # input rows (pipelined)
                pl.BlockSpec((d_in, d_in), lambda i: (0, 0)),      # W1 (resident)
                pl.BlockSpec((d_in, d_proj), lambda i: (0, 0)),    # W2 (resident)
            ],
            out_specs=pl.BlockSpec((br, d_proj), lambda i: (i, 0)),
        ),
        compiler_params=pltpu.CompilerParams(
            dimension_semantics=("parallel",),
            vmem_limit_bytes=_maybe_vmem_limit(est)),
    )(x, w1, w2)


# ----------------------------------- kernel 2: tiled NT-Xent (online logsumexp + positives)
def ntxent_kernel(zn_row_ref, zn_col_ref, zn_pos_ref, out_ref, m_scr, l_scr,
                  *, inv_temp, block_rows, block_cols):
    j = pl.program_id(1)

    @pl.when(j == 0)
    def _():
        m_scr[...] = jnp.full_like(m_scr, -jnp.inf)
        l_scr[...] = jnp.zeros_like(l_scr)

    # sim tile = (zn_rows @ zn_cols^T) / T, without materializing a transpose.
    sim = lax.dot_general(zn_row_ref[...], zn_col_ref[...],
                          dimension_numbers=(((1,), (1,)), ((), ())),
                          preferred_element_type=jnp.float32) * inv_temp  # (Br, Bc) f32

    # Mask the global diagonal (self-similarity) inside this tile; stay in f32.
    row = pl.program_id(0) * block_rows + lax.broadcasted_iota(jnp.int32, sim.shape, 0)
    col = j * block_cols + lax.broadcasted_iota(jnp.int32, sim.shape, 1)
    sim = jnp.where(row == col, -1e30, sim)

    # Online logsumexp update over column tiles.
    m_prev = m_scr[...]
    m_new = jnp.maximum(m_prev, jnp.max(sim, axis=-1, keepdims=True))
    l_scr[...] = (jnp.exp(m_prev - m_new) * l_scr[...]
                  + jnp.sum(jnp.exp(sim - m_new), axis=-1, keepdims=True))
    m_scr[...] = m_new

    @pl.when(j == pl.num_programs(1) - 1)
    def _():
        # Positive term zn[i] . zn[(i+N) mod 2N], computed directly from the partner
        # row block (no masked full-row reduce over sim).
        q = zn_row_ref[...].astype(jnp.float32)
        p = zn_pos_ref[...].astype(jnp.float32)
        pos = jnp.sum(q * p, axis=-1, keepdims=True) * inv_temp
        lse = m_scr[...] + jnp.log(l_scr[...])
        out_ref[...] = lse - pos


def _ntxent_per_row(zn, n, inv_temp):
    two_n, d_proj = zn.shape
    br = _pick_block(n, 128)        # row block; divides n so partner blocks are aligned
    bc = _pick_block(two_n, 512)    # column block; streamed / pipelined
    num_row_blocks = two_n // br
    half_blocks = n // br
    itemsize = zn.dtype.itemsize
    est = (2 * bc * d_proj + 2 * br * d_proj) * itemsize + 2 * br * bc * 4 + 8 * br * 4

    kernel = functools.partial(ntxent_kernel, inv_temp=inv_temp,
                               block_rows=br, block_cols=bc)
    return pl.pallas_call(
        kernel,
        out_shape=jax.ShapeDtypeStruct((two_n, 1), jnp.float32),
        grid_spec=pltpu.PrefetchScalarGridSpec(
            num_scalar_prefetch=0,
            grid=(num_row_blocks, two_n // bc),
            in_specs=[
                pl.BlockSpec((br, d_proj), lambda i, j: (i, 0)),            # query rows
                pl.BlockSpec((bc, d_proj), lambda i, j: (j, 0)),            # key rows
                pl.BlockSpec((br, d_proj),                                   # positive partners
                             lambda i, j: ((i + half_blocks) % num_row_blocks, 0)),
            ],
            out_specs=pl.BlockSpec((br, 1), lambda i, j: (i, 0)),
            scratch_shapes=[pltpu.VMEM((br, 1), jnp.float32),   # running max
                            pltpu.VMEM((br, 1), jnp.float32)],  # running sum
        ),
        compiler_params=pltpu.CompilerParams(
            dimension_semantics=("parallel", "arbitrary"),
            vmem_limit_bytes=_maybe_vmem_limit(est)),
    )(zn, zn, zn)


# ------------------------------------------------------------------ public wrapper
def simclr_v2_loss(og, aug, w1, w2, temperature, *, compute_dtype=jnp.bfloat16):
    n, d_in = og.shape
    d_proj = w2.shape[1]
    assert aug.shape == (n, d_in)
    assert w1.shape == (d_in, d_in) and w2.shape == (d_in, d_proj)
    assert n % 8 == 0, "batch size per view must be a multiple of 8 (sublane tiling)"

    inv_temp = 1.0 / float(temperature)
    cd = jnp.dtype(compute_dtype)

    # One (2N, D_in) operand -> one projection pass for both views.
    x = jnp.concatenate([og, aug], axis=0).astype(cd)
    zn = _project_normalize(x, w1.astype(cd), w2.astype(cd))   # (2N, D_proj), normalized
    per_row = _ntxent_per_row(zn, n, inv_temp)                 # (2N, 1): lse_i - pos_i
    return jnp.sum(per_row) / (2 * n)


# ------------------------------------------------------------------ pure-JAX reference
def simclr_v2_loss_ref(og, aug, w1, w2, temperature, *, compute_dtype=jnp.float32):
    cd = jnp.dtype(compute_dtype)
    x = jnp.concatenate([og, aug], axis=0).astype(cd)
    h = jnp.dot(x, w1.astype(cd), preferred_element_type=jnp.float32)
    h = jnp.maximum(h, 0.0).astype(cd)
    z = jnp.dot(h, w2.astype(cd), preferred_element_type=jnp.float32)
    zn = (z * lax.rsqrt(jnp.maximum(jnp.sum(z * z, -1, keepdims=True), 1e-12))).astype(cd)

    inv_temp = 1.0 / float(temperature)
    sim = lax.dot_general(zn, zn, (((1,), (1,)), ((), ())),
                          preferred_element_type=jnp.float32) * inv_temp
    two_n = sim.shape[0]
    n = two_n // 2
    sim = jnp.where(jnp.eye(two_n, dtype=bool), -1e30, sim)
    m = jnp.max(sim, axis=-1, keepdims=True)
    lse = (m + jnp.log(jnp.sum(jnp.exp(sim - m), axis=-1, keepdims=True)))[:, 0]
    znf = zn.astype(jnp.float32)
    pos_half = jnp.sum(znf[:n] * znf[n:], axis=-1) * inv_temp
    pos = jnp.concatenate([pos_half, pos_half], axis=0)
    return jnp.mean(lse - pos)


if __name__ == "__main__":
    N = 8               # batch size per view
    input_dim = 32
    projection_dim = 16
    temperature = 0.5

    key = jax.random.PRNGKey(0)
    k1, k2, k3, k4 = jax.random.split(key, 4)

    og = jax.random.normal(k1, (N, input_dim), jnp.float32)
    aug = jax.random.normal(k2, (N, input_dim), jnp.float32)
    # PyTorch nn.Linear stores (out, in); we keep the transposed (in, out) layout so
    # the kernel computes x @ W directly.
    w1 = jax.random.normal(k3, (input_dim, input_dim), jnp.float32) / jnp.sqrt(input_dim)
    w2 = jax.random.normal(k4, (input_dim, projection_dim), jnp.float32) / jnp.sqrt(input_dim)

    # Full-precision path: tight check against the f32 reference.
    loss_f32 = simclr_v2_loss(og, aug, w1, w2, temperature, compute_dtype=jnp.float32)
    jax.block_until_ready(loss_f32)
    ref_f32 = simclr_v2_loss_ref(og, aug, w1, w2, temperature, compute_dtype=jnp.float32)
    assert jnp.allclose(loss_f32, ref_f32, atol=1e-4, rtol=1e-4), (loss_f32, ref_f32)

    # bf16 matmul path (default, MXU-native): check against a reference using the same casts.
    loss_bf16 = simclr_v2_loss(og, aug, w1, w2, temperature, compute_dtype=jnp.bfloat16)
    jax.block_until_ready(loss_bf16)
    ref_bf16 = simclr_v2_loss_ref(og, aug, w1, w2, temperature, compute_dtype=jnp.bfloat16)
    assert jnp.allclose(loss_bf16, ref_bf16, atol=5e-3, rtol=5e-3), (loss_bf16, ref_bf16)

    print("KERNEL_OK")
</pallas_src>

<mosaic_0001>
module attributes {stable_mosaic.version = 11 : i64} {
  func.func @projection_kernel(%arg0: i32, %arg1: memref<16x32xf32, #tpu.memory_space<vmem>>, %arg2: memref<32x32xf32, #tpu.memory_space<vmem>>, %arg3: memref<32x16xf32, #tpu.memory_space<vmem>>, %arg4: memref<16x16xf32, #tpu.memory_space<vmem>>) attributes {dimension_semantics = [#tpu.dimension_semantics<parallel>], iteration_bounds = array<i64: 1>, scalar_prefetch = 0 : i64, scratch_operands = 0 : i64, tpu.core_type = #tpu.core_type<tc>, window_params = [{transform_indices = @transform_0, window_bounds = array<i64: 16, 32>}, {pipeline_mode = #tpu.pipeline_mode<synchronous>, transform_indices = @transform_1, window_bounds = array<i64: 32, 32>}, {pipeline_mode = #tpu.pipeline_mode<synchronous>, transform_indices = @transform_2, window_bounds = array<i64: 32, 16>}, {transform_indices = @transform_3, window_bounds = array<i64: 16, 16>}]} {
    %c0 = arith.constant 0 : index
    %c0_0 = arith.constant 0 : index
    %0 = vector.load %arg1[%c0, %c0_0] : memref<16x32xf32, #tpu.memory_space<vmem>>, vector<16x32xf32>
    %c0_1 = arith.constant 0 : index
    %c0_2 = arith.constant 0 : index
    %1 = vector.load %arg2[%c0_1, %c0_2] : memref<32x32xf32, #tpu.memory_space<vmem>>, vector<32x32xf32>
    %cst = arith.constant dense<0.000000e+00> : vector<16x32xf32>
    %2 = tpu.matmul %0, %1, %cst {dimension_numbers = #tpu.dot_dimension_numbers<[1], [0], [0], [1], [0, 0, 1, 1], [], []>} : vector<16x32xf32>, vector<32x32xf32>, vector<16x32xf32> -> vector<16x32xf32>
    %cst_3 = arith.constant 0.000000e+00 : f32
    %3 = vector.broadcast %cst_3 : f32 to vector<16x32xf32>
    %4 = arith.maximumf %2, %3 : vector<16x32xf32>
    %c0_4 = arith.constant 0 : index
    %c0_5 = arith.constant 0 : index
    %5 = vector.load %arg3[%c0_4, %c0_5] : memref<32x16xf32, #tpu.memory_space<vmem>>, vector<32x16xf32>
    %cst_6 = arith.constant dense<0.000000e+00> : vector<16x16xf32>
    %6 = tpu.matmul %4, %5, %cst_6 {dimension_numbers = #tpu.dot_dimension_numbers<[1], [0], [0], [1], [0, 0, 1, 1], [], []>} : vector<16x32xf32>, vector<32x16xf32>, vector<16x16xf32> -> vector<16x16xf32>
    %7 = arith.mulf %6, %6 : vector<16x16xf32>
    %cst_7 = arith.constant dense<0.000000e+00> : vector<16xf32>
    %8 = vector.multi_reduction <add>, %7, %cst_7 [1] : vector<16x16xf32> to vector<16xf32>
    %9 = vector.shape_cast %8 : vector<16xf32> to vector<16x1xf32>
    %cst_8 = arith.constant 9.99999996E-13 : f32
    %10 = vector.broadcast %cst_8 : f32 to vector<16x1xf32>
    %11 = arith.maximumf %9, %10 : vector<16x1xf32>
    %12 = math.rsqrt %11 : vector<16x1xf32>
    %13 = vector.broadcast %12 : vector<16x1xf32> to vector<16x16xf32>
    %14 = arith.mulf %6, %13 : vector<16x16xf32>
    %c0_9 = arith.constant 0 : index
    %c0_10 = arith.constant 0 : index
    %15 = vector.load %arg4[%c0_9, %c0_10] : memref<16x16xf32, #tpu.memory_space<vmem>>, vector<16x16xf32>
    tpu.vector_store %arg4[%c0_9, %c0_10], %14 {strides = array<i32>} : memref<16x16xf32, #tpu.memory_space<vmem>>, vector<16x16xf32>,
    return
  }
  func.func @transform_0(%arg0: i32) -> (i32, i32) {
    %c0_i32 = arith.constant 0 : i32
    %c0_i32_0 = arith.constant 0 : i32
    return %arg0, %c0_i32 : i32, i32
  }
  func.func @transform_1(%arg0: i32) -> (i32, i32) {
    %c0_i32 = arith.constant 0 : i32
    %c0_i32_0 = arith.constant 0 : i32
    %c0_i32_1 = arith.constant 0 : i32
    return %c0_i32, %c0_i32_0 : i32, i32
  }
  func.func @transform_2(%arg0: i32) -> (i32, i32) {
    %c0_i32 = arith.constant 0 : i32
    %c0_i32_0 = arith.constant 0 : i32
    %c0_i32_1 = arith.constant 0 : i32
    return %c0_i32, %c0_i32_0 : i32, i32
  }
  func.func @transform_3(%arg0: i32) -> (i32, i32) {
    %c0_i32 = arith.constant 0 : i32
    %c0_i32_0 = arith.constant 0 : i32
    return %arg0, %c0_i32 : i32, i32
  }
}

</mosaic_0001>

<llo_original>
// kernel: tpu_custom_call.1
$region0: #{tpu_custom_call.1}
  #allocation0 [shape = 'u32[]', space=smem, size = 0x4, offset = 0x4, fixed_abs, tag = 'smem constant byte address 0x4 - core index']
  #allocation1 [shape = 'u32[144,128]{1,0:T(1,128)}', space=vmem, size = 0x12000, scoped, tag = 'internal scratch']
  %s0 = inlined_call_operand.vmem [shape: f32[16,32], index: 0, kind: input, shape index: {}]
  %s1 = inlined_call_operand.vmem [shape: f32[32,32], index: 1, kind: input, shape index: {}]
  %s2 = inlined_call_operand.vmem [shape: f32[32,16], index: 2, kind: input, shape index: {}]
  %s3 = inlined_call_operand.hbm [shape: f32[16,16], index: 3, kind: output, shape index: {}]
  %s4 = sld [smem:[#allocation0]]
  $region22: #{tpu_custom_call.1} parent=0
    _
  %s6 = ssub.s32 1, %s4
  %s7 = scalar_select 0, %s6, %s4
  $region1: #{tpu_custom_call.1} parent=0
    #allocation2 [shape = 'u8[8192]{0}', space=vmem, size = 0x2000, scoped, tag = 'output window, operand 0, single buffered']
    #allocation3 [shape = 's32[1]{0}', space=sflag, size = 0x4, scoped, tag = 'scoped memory for tpu_custom_call.1']
    %8 = vsyncpa [#allocation3], 0
    // Predicated region
    $region2: #{tpu_custom_call.1} parent=1 // pred_check
      _
    $region3: #{tpu_custom_call.1} parent=1 // pred_check_branch
      %10 = sbr.rel (0) target = $region5
    $region4: #{tpu_custom_call.1} parent=1 // pred_region
      _
    $region5: #{tpu_custom_call.1} parent=1 // pred_fallthru
      _
    // Predicated region
    $region6: #{tpu_custom_call.1} parent=1 // pred_check
      _
    $region7: #{tpu_custom_call.1} parent=1 // pred_check_branch
      %12 = sbr.rel (0) target = $region9
    $region8: #{tpu_custom_call.1} parent=1 // pred_region
      _
    $region9: #{tpu_custom_call.1} parent=1 // pred_fallthru
      _
    // Predicated region
    $region10: #{tpu_custom_call.1} parent=1 // pred_check
      _
    $region11: #{tpu_custom_call.1} parent=1 // pred_check_branch
      %14 = sbr.rel (0) target = $region13
    $region12: #{tpu_custom_call.1} parent=1 // pred_region
      _
    $region13: #{tpu_custom_call.1} parent=1 // pred_fallthru
      _
    %v15 = vld [vmem:[%s0] sm:$0xff]
    %v16 = vld [vmem:[%s0 + $0x8] sm:$0xff]
    %v17 = vld [vmem:[%s1] sm:$0xff]
    %v18 = vld [vmem:[%s1 + $0x8] sm:$0xff]
    %v19 = vld [vmem:[%s1 + $0x10] sm:$0xff]
    %v20 = vld [vmem:[%s1 + $0x18] sm:$0xff]
    %vm21 = vcmask 261120
    %v23 = vsel %vm21, %v15, 0
    %v26 = vsel %vm21, %v16, 0
    %28 = vmatprep.subr.mxu0 0.0
    %29 = vmatpush1.msra.mxu0 %v17
    %30 = vmatprep.subr.mxu0 0.0
    %31 = vmatpush1.msra.mxu0 %v18
    %32 = vmatprep.subr.mxu0 0.0
    %33 = vmatpush1.msra.mxu0 %v19
    %34 = vmatprep.subr.mxu0 0.0
    %35 = vmatpush1.msra.mxu0 %v20
    %36 = vmatprep.subr.mxu0 0.0
    %37 = vmatpush1.msra.mxu0 0.0
    %38 = vmatprep.subr.mxu0 0.0
    %39 = vmatpush1.msra.mxu0 0.0
    %40 = vmatprep.subr.mxu0 0.0
    %41 = vmatpush1.msra.mxu0 0.0
    %42 = vmatprep.subr.mxu0 0.0
    %43 = vmatpush1.msra.mxu0 0.0
    %44 = vmatprep.subr.mxu0 0.0
    %45 = vmatpush1.msra.mxu0 0.0
    %46 = vmatprep.subr.mxu0 0.0
    %47 = vmatpush1.msra.mxu0 0.0
    %48 = vmatprep.subr.mxu0 0.0
    %49 = vmatpush1.msra.mxu0 0.0
    %50 = vmatprep.subr.mxu0 0.0
    %51 = vmatpush1.msra.mxu0 0.0
    %52 = vmatprep.subr.mxu0 0.0
    %53 = vmatpush1.msra.mxu0 0.0
    %54 = vmatprep.subr.mxu0 0.0
    %55 = vmatpush1.msra.mxu0 0.0
    %56 = vmatprep.subr.mxu0 0.0
    %57 = vmatpush1.msra.mxu0 0.0
    %58 = vmatprep.subr.mxu0 0.0
    %59 = vmatpush1.msra.mxu0 0.0
    %60 = vmatprep.subr.mxu0 0.0
    %61 = vmatpush1.msra.mxu0 0.0
    %62 = vmatprep.subr.mxu0 0.0
    %63 = vmatpush1.msra.mxu0 0.0
    %64 = vmatprep.subr.mxu0 0.0
    %65 = vmatpush1.msra.mxu0 0.0
    %66 = vmatprep.subr.mxu0 0.0
    %67 = vmatpush1.msra.mxu0 0.0
    %68 = vmatprep.subr.mxu0 0.0
    %69 = vmatpush1.msra.mxu0 0.0
    %70 = vmatprep.subr.mxu0 0.0
    %71 = vmatpush1.msra.mxu0 0.0
    %72 = vmatprep.subr.mxu0 0.0
    %73 = vmatpush1.msra.mxu0 0.0
    %74 = vmatprep.subr.mxu0 0.0
    %75 = vmatpush1.msra.mxu0 0.0
    %76 = vmatprep.subr.mxu0 0.0
    %77 = vmatpush1.msra.mxu0 0.0
    %78 = vmatprep.subr.mxu0 0.0
    %79 = vmatpush1.msra.mxu0 0.0
    %80 = vmatprep.subr.mxu0 0.0
    %81 = vmatpush1.msra.mxu0 0.0
    %82 = vmatprep.subr.mxu0 0.0
    %83 = vmatpush1.msra.mxu0 0.0
    %84 = vmatprep.subr.mxu0 0.0
    %85 = vmatpush1.msra.mxu0 0.0
    %86 = vmatprep.subr.mxu0 0.0
    %87 = vmatpush1.msra.mxu0 0.0
    %88 = vmatprep.subr.mxu0 0.0
    %89 = vmatpush1.msra.mxu0 0.0
    %90 = vmatprep.subr.mxu0 0.0
    %91 = vmatpush1.msra.mxu0 0.0
    %92 = vmatprep.mubr.f32.mxu0 0.0
    %93 = vmatmul.mubr.f32.gmra.mrb[0].mxu0 %v23
    %v94 = vpop.f32.mrb[0].mxu0
    %v95 = vadd.f32 0.0, %v94
    %v96 = vpop.f32.mrb[0].mxu0
    %97 = vmatprep.mubr.f32.mxu0 0.0
    %98 = vmatmul.mubr.f32.gmra.mrb[0].mxu0 %v26
    %v99 = vpop.f32.mrb[0].mxu0
    %v100 = vadd.f32 0.0, %v99
    %v101 = vpop.f32.mrb[0].mxu0
    %102 = vdwg.mxu0
    %v103 = vmax.f32 %v95, 0.0
    %v104 = vmax.f32 %v100, 0.0
    %v105 = vld [vmem:[%s2] sm:$0xff]
    %v106 = vld [vmem:[%s2 + $0x8] sm:$0xff]
    %v107 = vld [vmem:[%s2 + $0x10] sm:$0xff]
    %v108 = vld [vmem:[%s2 + $0x18] sm:$0xff]
    %v110 = vsel %vm21, %v103, 0
    %v113 = vsel %vm21, %v104, 0
    %115 = vmatprep.subr.mxu0 0.0
    %116 = vmatpush1.msra.mxu0 %v105
    %117 = vmatprep.subr.mxu0 0.0
    %118 = vmatpush1.msra.mxu0 %v106
    %119 = vmatprep.subr.mxu0 0.0
    %120 = vmatpush1.msra.mxu0 %v107
    %121 = vmatprep.subr.mxu0 0.0
    %122 = vmatpush1.msra.mxu0 %v108
    %123 = vmatprep.subr.mxu0 0.0
    %124 = vmatpush1.msra.mxu0 0.0
    %125 = vmatprep.subr.mxu0 0.0
    %126 = vmatpush1.msra.mxu0 0.0
    %127 = vmatprep.subr.mxu0 0.0
    %128 = vmatpush1.msra.mxu0 0.0
    %129 = vmatprep.subr.mxu0 0.0
    %130 = vmatpush1.msra.mxu0 0.0
    %131 = vmatprep.subr.mxu0 0.0
    %132 = vmatpush1.msra.mxu0 0.0
    %133 = vmatprep.subr.mxu0 0.0
    %134 = vmatpush1.msra.mxu0 0.0
    %135 = vmatprep.subr.mxu0 0.0
    %136 = vmatpush1.msra.mxu0 0.0
    %137 = vmatprep.subr.mxu0 0.0
    %138 = vmatpush1.msra.mxu0 0.0
    %139 = vmatprep.subr.mxu0 0.0
    %140 = vmatpush1.msra.mxu0 0.0
    %141 = vmatprep.subr.mxu0 0.0
    %142 = vmatpush1.msra.mxu0 0.0
    %143 = vmatprep.subr.mxu0 0.0
    %144 = vmatpush1.msra.mxu0 0.0
    %145 = vmatprep.subr.mxu0 0.0
    %146 = vmatpush1.msra.mxu0 0.0
    %147 = vmatprep.subr.mxu0 0.0
    %148 = vmatpush1.msra.mxu0 0.0
    %149 = vmatprep.subr.mxu0 0.0
    %150 = vmatpush1.msra.mxu0 0.0
    %151 = vmatprep.subr.mxu0 0.0
    %152 = vmatpush1.msra.mxu0 0.0
    %153 = vmatprep.subr.mxu0 0.0
    %154 = vmatpush1.msra.mxu0 0.0
    %155 = vmatprep.subr.mxu0 0.0
    %156 = vmatpush1.msra.mxu0 0.0
    %157 = vmatprep.subr.mxu0 0.0
    %158 = vmatpush1.msra.mxu0 0.0
    %159 = vmatprep.subr.mxu0 0.0
    %160 = vmatpush1.msra.mxu0 0.0
    %161 = vmatprep.subr.mxu0 0.0
    %162 = vmatpush1.msra.mxu0 0.0
    %163 = vmatprep.subr.mxu0 0.0
    %164 = vmatpush1.msra.mxu0 0.0
    %165 = vmatprep.subr.mxu0 0.0
    %166 = vmatpush1.msra.mxu0 0.0
    %167 = vmatprep.subr.mxu0 0.0
    %168 = vmatpush1.msra.mxu0 0.0
    %169 = vmatprep.subr.mxu0 0.0
    %170 = vmatpush1.msra.mxu0 0.0
    %171 = vmatprep.subr.mxu0 0.0
    %172 = vmatpush1.msra.mxu0 0.0
    %173 = vmatprep.subr.mxu0 0.0
    %174 = vmatpush1.msra.mxu0 0.0
    %175 = vmatprep.subr.mxu0 0.0
    %176 = vmatpush1.msra.mxu0 0.0
    %177 = vmatprep.subr.mxu0 0.0
    %178 = vmatpush1.msra.mxu0 0.0
    %179 = vmatprep.mubr.f32.mxu0 0.0
    %180 = vmatmul.mubr.f32.gmra.mrb[0].mxu0 %v110
    %v181 = vpop.f32.mrb[0].mxu0
    %v182 = vadd.f32 0.0, %v181
    %v183 = vpop.f32.mrb[0].mxu0
    %184 = vmatprep.mubr.f32.mxu0 0.0
    %185 = vmatmul.mubr.f32.gmra.mrb[0].mxu0 %v113
    %v186 = vpop.f32.mrb[0].mxu0
    %v187 = vadd.f32 0.0, %v186
    %v188 = vpop.f32.mrb[0].mxu0
    %189 = vdwg.mxu0
    %v190 = vmul.f32 %v182, %v182
    %v191 = vmul.f32 %v187, %v187
    %vm192 = vcmask 130048
    %v193 = vsel %vm192, %v190, 0.0
    %194 = vadd.xlane.f32.xlu0 %v193
    %v195 = vpop.xlane.xlu0 %194
    %v196 = vsel %vm192, %v191, 0.0
    %197 = vadd.xlane.f32.xlu0 %v196
    %v198 = vpop.xlane.xlu0 %197
    %v199 = vmax.f32 %v195, 1e-12
    %v200 = vmax.f32 %v198, 1e-12
    %v201 = vrsqrt.pop %v199
    %v202 = vrsqrt.pop %v200
    %v203 = vmul.f32 %v182, %v201
    %v204 = vmul.f32 %v187, %v202
    %205 = vst.msk [vmem:[#allocation2] sm:$0xff] %vm192, %v203
    %206 = vst.msk [vmem:[#allocation2 + $0x8] sm:$0xff] %vm192, %v204
    // Predicated region
    $region14: #{tpu_custom_call.1} parent=1 // pred_check
      _
    $region15: #{tpu_custom_call.1} parent=1 // pred_check_branch
      %208 = sbr.rel (0) target = $region17
    $region16: #{tpu_custom_call.1} parent=1 // pred_region
      %s210 = ssub.s32 256, 256
      %211 = vsyncadd [#allocation3], %s210
      %s212 = sshll.u32 [#allocation2], 4
      %s213 = int_to_ptr.vmem [resolvable:$true] %s212
      %218 = dma.vmem_to_hbm [thread:$0]  %s213, 256, %s3, [#allocation3], 128, 128, 8
    $region17: #{tpu_custom_call.1} parent=1 // pred_fallthru
      _
    // Predicated region
    $region18: #{tpu_custom_call.1} parent=1 // pred_check
      _
    $region19: #{tpu_custom_call.1} parent=1 // pred_check_branch
      %220 = sbr.rel (0) target = $region21
    $region20: #{tpu_custom_call.1} parent=1 // pred_region
      %221 = dma.done [#allocation3], 256
    $region21: #{tpu_custom_call.1} parent=1 // pred_fallthru
      _
    %222 = vsyncpa [#allocation3], 1

</llo_original>
